<compile_context>
chip_gen: v7x
topology: tpu7x:2x2x1
jax: 0.10.0
libtpu: 0.0.40
codegen_flags: <defaults>
</compile_context>

<pallas_src>
import jax
import jax.numpy as jnp
from jax.experimental import pallas as pl
from jax.experimental.pallas import tpu as pltpu

_LANE = 128                 # lane width: W_cat fused output dim padded to this
_DEFAULT_BATCH_TILE = 2048  # rows per grid step for large B (multiple of 8)


def _round_up(x, m):
    return ((x + m - 1) // m) * m


def _make_fused_heads_kernel(slices):
    """slices: tuple of (offset, size) into the fused output dim, one per head."""

    def kernel(x_ref, w_ref, b_ref, *out_refs):
        # y = x @ W_cat + b_cat.  W_cat is pre-transposed to [D, OUT_PAD] at
        # init, so this is a direct MXU matmul with f32 accumulation; the bias
        # add runs on the VPU.  Per-head columns are then stored straight to
        # their own (narrow, un-padded) output blocks.
        y = jnp.dot(x_ref[...], w_ref[...], preferred_element_type=jnp.float32)
        y = y + b_ref[...]
        for o_ref, (off, size) in zip(out_refs, slices):
            o_ref[...] = y[:, off:off + size].astype(o_ref.dtype)

    return kernel


def fused_linear_heads(x, w_cat, b_cat, slices, *, block_b=_DEFAULT_BATCH_TILE):
    """Single Pallas call computing all heads: returns a tuple of per-head arrays.

    x:      [B, D]         (f32)
    w_cat:  [D, OUT_PAD]   (pre-transposed, lane-padded fused weight, resident)
    b_cat:  [1, OUT_PAD]
    slices: tuple of (offset, size) per head into the fused output dim.
    """
    B, D = x.shape
    D2, out_pad = w_cat.shape
    assert D == D2, (D, D2)

    if B <= block_b:
        # Small B: full-extent block (always legal), single grid step.
        tb = B
    else:
        # Large B: cap at block_b but guarantee >= 2 grid steps so the
        # "parallel" batch axis can be sharded across both v7x TensorCores.
        tb = min(block_b, _round_up(pl.cdiv(B, 2), 8))
    grid = (pl.cdiv(B, tb),)

    out_total = sum(size for _, size in slices)
    out_shapes = tuple(
        jax.ShapeDtypeStruct((B, size), jnp.float32) for _, size in slices
    )
    # Last block dim equals the full (narrow) array dim -> legal and un-padded
    # in HBM; the block still pads to 128 lanes internally in VMEM.
    out_specs = tuple(
        pl.BlockSpec((tb, size), lambda i: (i, 0)) for _, size in slices
    )

    cost = pl.CostEstimate(
        flops=2 * B * D * out_total,
        transcendentals=0,
        bytes_accessed=4 * (B * D + D * out_pad + out_pad + B * out_total),
    )

    return pl.pallas_call(
        _make_fused_heads_kernel(slices),
        out_shape=out_shapes,
        grid=grid,
        in_specs=[
            pl.BlockSpec((tb, D), lambda i: (i, 0)),        # x tile (pipelined)
            pl.BlockSpec((D, out_pad), lambda i: (0, 0)),   # W resident in VMEM
            pl.BlockSpec((1, out_pad), lambda i: (0, 0)),   # b resident in VMEM
        ],
        out_specs=out_specs,
        compiler_params=pltpu.CompilerParams(
            # Batch axis is embarrassingly parallel -> megacore sharding on v7x.
            dimension_semantics=("parallel",),
        ),
        cost_estimate=cost,
    )(x, w_cat, b_cat)


class CompositeHead:
    """JAX/Pallas port of neural_lifetimes CompositeHead (forward pass only).

    `heads` is a dict name -> (W, b) in the nn.Linear convention:
        W: [out_k, D], b: [out_k].
    forward(x) returns {name: x @ W_k.T + b_k} exactly like the PyTorch module,
    computed with a single fused Pallas matmul over concatenated heads that
    emits each head's parameters as its own (un-padded) output array.
    """

    def __init__(self, heads, *, block_b=_DEFAULT_BATCH_TILE):
        self._block_b = block_b
        first_w = next(iter(heads.values()))[0]
        self.input_shape = first_w.shape[1]          # mirrors the PyTorch ctor

        # --- hoisted, one-time preprocessing of parameters -------------------
        ws, bs = [], []
        names, slices = [], []
        off = 0
        for name, (w, b) in heads.items():
            out_k, d = w.shape
            assert d == self.input_shape
            ws.append(w.T.astype(jnp.float32))       # pre-transpose -> [D, out_k]
            bs.append(b.astype(jnp.float32))
            names.append(name)
            slices.append((off, out_k))
            off += out_k
        self._names = tuple(names)
        self._slices = tuple(slices)

        out_total = off
        out_pad = max(_round_up(out_total, _LANE), _LANE)

        w_cat = jnp.concatenate(ws, axis=1)          # [D, out_total]
        b_cat = jnp.concatenate(bs, axis=0)          # [out_total]
        pad = out_pad - out_total
        if pad:
            # Pad only the VMEM-resident fused weight/bias (clean MXU layout);
            # the padded lanes never reach HBM since per-head outputs are
            # sliced from the accumulator inside the kernel.
            w_cat = jnp.pad(w_cat, ((0, 0), (0, pad)))
            b_cat = jnp.pad(b_cat, ((0, pad),))
        self.w_cat = w_cat                           # [D, out_pad]
        self.b_cat = b_cat.reshape(1, out_pad)       # [1, out_pad]

    def __call__(self, x):
        outs = fused_linear_heads(
            x, self.w_cat, self.b_cat, self._slices, block_b=self._block_b
        )
        return dict(zip(self._names, outs))

    # TODO(synk): loss_function()/distribution() build torch.distributions
    # objects and are not part of the tensor forward pass; not ported.


def _init_linear(key, out_features, in_features):
    """Deterministic init mimicking nn.Linear default (uniform +/- 1/sqrt(in))."""
    kw, kb = jax.random.split(key)
    bound = 1.0 / (in_features ** 0.5)
    w = jax.random.uniform(kw, (out_features, in_features), jnp.float32,
                           minval=-bound, maxval=bound)
    b = jax.random.uniform(kb, (out_features,), jnp.float32,
                           minval=-bound, maxval=bound)
    return w, b


if __name__ == "__main__":
    key = jax.random.PRNGKey(0)
    B, D = 8, 32  # batch, hidden (input_shape of each head)

    k_x, k_dt, k_amt, k_cat, k_x2 = jax.random.split(key, 5)
    x = jax.random.normal(k_x, (B, D), jnp.float32)

    # Three representative heads (distribution-parameter linear heads):
    #   "dt"     -> Exponential rate          (out = 1)
    #   "amount" -> Normal (mu, log_sigma)    (out = 2)
    #   "cat"    -> Categorical logits        (out = 5)
    heads = {
        "dt":     _init_linear(k_dt, 1, D),
        "amount": _init_linear(k_amt, 2, D),
        "cat":    _init_linear(k_cat, 5, D),
    }

    model = CompositeHead(heads)
    out = model(x)
    jax.block_until_ready(out)

    # Correctness check against plain-JAX nn.Linear reference per head.
    for name, (w, b) in heads.items():
        ref = x @ w.T + b
        assert out[name].shape == (B, w.shape[0]), (name, out[name].shape)
        assert jnp.allclose(out[name], ref, atol=1e-5, rtol=1e-5), name

    # Edge-case check: multi-step grid with a partial last batch block
    # (B not a multiple of the tile) exercises the masked-writeback path.
    B2 = 13
    x2 = jax.random.normal(k_x2, (B2, D), jnp.float32)
    model_tiled = CompositeHead(heads, block_b=8)   # forces grid=(2,), tb=8
    out2 = model_tiled(x2)
    jax.block_until_ready(out2)
    for name, (w, b) in heads.items():
        ref2 = x2 @ w.T + b
        assert out2[name].shape == (B2, w.shape[0]), (name, out2[name].shape)
        assert jnp.allclose(out2[name], ref2, atol=1e-5, rtol=1e-5), name

    print("KERNEL_OK")
</pallas_src>

<mosaic_0001>
module attributes {stable_mosaic.version = 11 : i64} {
  func.func @kernel(%arg0: i32, %arg1: memref<8x32xf32, #tpu.memory_space<vmem>>, %arg2: memref<32x128xf32, #tpu.memory_space<vmem>>, %arg3: memref<1x128xf32, #tpu.memory_space<vmem>>, %arg4: memref<8x1xf32, #tpu.memory_space<vmem>>, %arg5: memref<8x2xf32, #tpu.memory_space<vmem>>, %arg6: memref<8x5xf32, #tpu.memory_space<vmem>>) attributes {dimension_semantics = [#tpu.dimension_semantics<parallel>], iteration_bounds = array<i64: 1>, scalar_prefetch = 0 : i64, scratch_operands = 0 : i64, tpu.core_type = #tpu.core_type<tc>, window_params = [{transform_indices = @transform_0, window_bounds = array<i64: 8, 32>}, {pipeline_mode = #tpu.pipeline_mode<synchronous>, transform_indices = @transform_1, window_bounds = array<i64: 32, 128>}, {pipeline_mode = #tpu.pipeline_mode<synchronous>, transform_indices = @transform_2, window_bounds = array<i64: 1, 128>}, {transform_indices = @transform_3, window_bounds = array<i64: 8, 1>}, {transform_indices = @transform_4, window_bounds = array<i64: 8, 2>}, {transform_indices = @transform_5, window_bounds = array<i64: 8, 5>}]} {
    %c0 = arith.constant 0 : index
    %c0_0 = arith.constant 0 : index
    %0 = vector.load %arg1[%c0, %c0_0] : memref<8x32xf32, #tpu.memory_space<vmem>>, vector<8x32xf32>
    %c0_1 = arith.constant 0 : index
    %c0_2 = arith.constant 0 : index
    %1 = vector.load %arg2[%c0_1, %c0_2] : memref<32x128xf32, #tpu.memory_space<vmem>>, vector<32x128xf32>
    %cst = arith.constant dense<0.000000e+00> : vector<8x128xf32>
    %2 = tpu.matmul %0, %1, %cst {dimension_numbers = #tpu.dot_dimension_numbers<[1], [0], [0], [1], [0, 0, 1, 1], [], []>} : vector<8x32xf32>, vector<32x128xf32>, vector<8x128xf32> -> vector<8x128xf32>
    %c0_3 = arith.constant 0 : index
    %c0_4 = arith.constant 0 : index
    %3 = vector.load %arg3[%c0_3, %c0_4] : memref<1x128xf32, #tpu.memory_space<vmem>>, vector<1x128xf32>
    %4 = vector.broadcast %3 : vector<1x128xf32> to vector<8x128xf32>
    %5 = arith.addf %2, %4 : vector<8x128xf32>
    %6 = vector.extract_strided_slice %5 {offsets = [0, 0], sizes = [8, 1], strides = [1, 1]} : vector<8x128xf32> to vector<8x1xf32>
    %c0_5 = arith.constant 0 : index
    %c0_6 = arith.constant 0 : index
    %7 = vector.load %arg4[%c0_5, %c0_6] : memref<8x1xf32, #tpu.memory_space<vmem>>, vector<8x1xf32>
    tpu.vector_store %arg4[%c0_5, %c0_6], %6 {strides = array<i32>} : memref<8x1xf32, #tpu.memory_space<vmem>>, vector<8x1xf32>,
    %8 = vector.extract_strided_slice %5 {offsets = [0, 1], sizes = [8, 2], strides = [1, 1]} : vector<8x128xf32> to vector<8x2xf32>
    %c0_7 = arith.constant 0 : index
    %c0_8 = arith.constant 0 : index
    %9 = vector.load %arg5[%c0_7, %c0_8] : memref<8x2xf32, #tpu.memory_space<vmem>>, vector<8x2xf32>
    tpu.vector_store %arg5[%c0_7, %c0_8], %8 {strides = array<i32>} : memref<8x2xf32, #tpu.memory_space<vmem>>, vector<8x2xf32>,
    %10 = vector.extract_strided_slice %5 {offsets = [0, 3], sizes = [8, 5], strides = [1, 1]} : vector<8x128xf32> to vector<8x5xf32>
    %c0_9 = arith.constant 0 : index
    %c0_10 = arith.constant 0 : index
    %11 = vector.load %arg6[%c0_9, %c0_10] : memref<8x5xf32, #tpu.memory_space<vmem>>, vector<8x5xf32>
    tpu.vector_store %arg6[%c0_9, %c0_10], %10 {strides = array<i32>} : memref<8x5xf32, #tpu.memory_space<vmem>>, vector<8x5xf32>,
    return
  }
  func.func @transform_0(%arg0: i32) -> (i32, i32) {
    %c0_i32 = arith.constant 0 : i32
    %c0_i32_0 = arith.constant 0 : i32
    return %arg0, %c0_i32 : i32, i32
  }
  func.func @transform_1(%arg0: i32) -> (i32, i32) {
    %c0_i32 = arith.constant 0 : i32
    %c0_i32_0 = arith.constant 0 : i32
    %c0_i32_1 = arith.constant 0 : i32
    return %c0_i32, %c0_i32_0 : i32, i32
  }
  func.func @transform_2(%arg0: i32) -> (i32, i32) {
    %c0_i32 = arith.constant 0 : i32
    %c0_i32_0 = arith.constant 0 : i32
    %c0_i32_1 = arith.constant 0 : i32
    return %c0_i32, %c0_i32_0 : i32, i32
  }
  func.func @transform_3(%arg0: i32) -> (i32, i32) {
    %c0_i32 = arith.constant 0 : i32
    %c0_i32_0 = arith.constant 0 : i32
    return %arg0, %c0_i32 : i32, i32
  }
  func.func @transform_4(%arg0: i32) -> (i32, i32) {
    %c0_i32 = arith.constant 0 : i32
    %c0_i32_0 = arith.constant 0 : i32
    return %arg0, %c0_i32 : i32, i32
  }
  func.func @transform_5(%arg0: i32) -> (i32, i32) {
    %c0_i32 = arith.constant 0 : i32
    %c0_i32_0 = arith.constant 0 : i32
    return %arg0, %c0_i32 : i32, i32
  }
}

</mosaic_0001>

<llo_original>
// kernel: tpu_custom_call.1
$region0: #{tpu_custom_call.1}
  #allocation0 [shape = 'u32[]', space=smem, size = 0x4, offset = 0x4, fixed_abs, tag = 'smem constant byte address 0x4 - core index']
  #allocation1 [shape = 'u32[144,128]{1,0:T(1,128)}', space=vmem, size = 0x12000, scoped, tag = 'internal scratch']
  %s0 = inlined_call_operand.hbm [shape: f32[8,32], index: 0, kind: input, shape index: {}]
  %s1 = inlined_call_operand.hbm [shape: f32[32,128], index: 1, kind: input, shape index: {}]
  %s2 = inlined_call_operand.vmem [shape: f32[1,128], index: 2, kind: input, shape index: {}]
  %s3 = inlined_call_operand.vmem [shape: f32[8,1], index: 3, kind: output, shape index: {0}]
  %s4 = inlined_call_operand.vmem [shape: f32[8,2], index: 4, kind: output, shape index: {1}]
  %s5 = inlined_call_operand.hbm [shape: f32[8,5], index: 5, kind: output, shape index: {2}]
  %6 = xla_tuple %s3, %s4, %s5
  %s7 = sld [smem:[#allocation0]]
  $region46: #{tpu_custom_call.1} parent=0
    _
  %s9 = ssub.s32 1, %s7
  %s10 = scalar_select 0, %s9, %s7
  $region1: #{tpu_custom_call.1} parent=0
    #allocation2 [shape = 'u8[4096]{0}', space=vmem, size = 0x1000, scoped, tag = 'input window, operand 0, single buffered']
    #allocation3 [shape = 's32[1]{0}', space=sflag, size = 0x4, scoped, tag = 'scoped memory for tpu_custom_call.1']
    #allocation4 [shape = 's32[1]{0}', space=sflag, size = 0x4, scoped, tag = 'scoped memory for tpu_custom_call.1']
    #allocation5 [shape = 'u8[16384]{0}', space=vmem, size = 0x4000, scoped, tag = 'input window, operand 1, single buffered']
    #allocation6 [shape = 's32[1]{0}', space=sflag, size = 0x4, scoped, tag = 'scoped memory for tpu_custom_call.1']
    #allocation7 [shape = 'u8[4096]{0}', space=vmem, size = 0x1000, scoped, tag = 'output window, operand 2, single buffered']
    %11 = vsyncpa [#allocation3], 0
    %12 = vsyncpa [#allocation6], 0
    %13 = vsyncpa [#allocation4], 0
    // Predicated region
    $region2: #{tpu_custom_call.1} parent=1 // pred_check
      _
    $region3: #{tpu_custom_call.1} parent=1 // pred_check_branch
      %15 = sbr.rel (0) target = $region5
    $region4: #{tpu_custom_call.1} parent=1 // pred_region
      %s17 = ssub.s32 128, 128
      %18 = vsyncadd [#allocation3], %s17
      %s20 = sshll.u32 [#allocation2], 4
      %s21 = int_to_ptr.vmem [resolvable:$true] %s20
      %23 = dma.hbm_to_vmem [thread:$0]  %s0, 128, %s21, [#allocation3]
    $region5: #{tpu_custom_call.1} parent=1 // pred_fallthru
      _
    // Predicated region
    $region6: #{tpu_custom_call.1} parent=1 // pred_check
      _
    $region7: #{tpu_custom_call.1} parent=1 // pred_check_branch
      %25 = sbr.rel (0) target = $region9
    $region8: #{tpu_custom_call.1} parent=1 // pred_region
      %s27 = ssub.s32 512, 512
      %28 = vsyncadd [#allocation6], %s27
      %s29 = sshll.u32 [#allocation5], 4
      %s30 = int_to_ptr.vmem [resolvable:$true] %s29
      %35 = dma.hbm_to_vmem [thread:$0]  %s1, 512, %s30, [#allocation6], 128, 128, 8
    $region9: #{tpu_custom_call.1} parent=1 // pred_fallthru
      _
    // Predicated region
    $region10: #{tpu_custom_call.1} parent=1 // pred_check
      _
    $region11: #{tpu_custom_call.1} parent=1 // pred_check_branch
      %37 = sbr.rel (0) target = $region13
    $region12: #{tpu_custom_call.1} parent=1 // pred_region
      _
    $region13: #{tpu_custom_call.1} parent=1 // pred_fallthru
      _
    // Predicated region
    $region14: #{tpu_custom_call.1} parent=1 // pred_check
      _
    $region15: #{tpu_custom_call.1} parent=1 // pred_check_branch
      %39 = sbr.rel (0) target = $region17
    $region16: #{tpu_custom_call.1} parent=1 // pred_region
      %40 = dma.done [#allocation3], 128
    $region17: #{tpu_custom_call.1} parent=1 // pred_fallthru
      _
    // Predicated region
    $region18: #{tpu_custom_call.1} parent=1 // pred_check
      _
    $region19: #{tpu_custom_call.1} parent=1 // pred_check_branch
      %42 = sbr.rel (0) target = $region21
    $region20: #{tpu_custom_call.1} parent=1 // pred_region
      %43 = dma.done [#allocation6], 512
    $region21: #{tpu_custom_call.1} parent=1 // pred_fallthru
      _
    %v44 = vld [vmem:[#allocation2] sm:$0xff]
    %v45 = vld [vmem:[#allocation5] sm:$0xff]
    %v46 = vld [vmem:[#allocation5 + $0x8] sm:$0xff]
    %v47 = vld [vmem:[#allocation5 + $0x10] sm:$0xff]
    %v48 = vld [vmem:[#allocation5 + $0x18] sm:$0xff]
    %v49 = vld [vmem:[%s2] sm:$0x1]
    %v51 = vlaneseq
    %v52 = vshrl.u32 %v51, 7
    %v53 = vsub.s32 0, %v52
    %v54 = vrot.slane %v49, %v53
    %vm56 = vcmask 261120
    %v58 = vsel %vm56, %v44, 0
    %60 = vmatprep.subr.mxu0 0.0
    %61 = vmatpush1.msra.mxu0 %v45
    %62 = vmatprep.subr.mxu0 0.0
    %63 = vmatpush1.msra.mxu0 %v46
    %64 = vmatprep.subr.mxu0 0.0
    %65 = vmatpush1.msra.mxu0 %v47
    %66 = vmatprep.subr.mxu0 0.0
    %67 = vmatpush1.msra.mxu0 %v48
    %68 = vmatprep.subr.mxu0 0.0
    %69 = vmatpush1.msra.mxu0 0.0
    %70 = vmatprep.subr.mxu0 0.0
    %71 = vmatpush1.msra.mxu0 0.0
    %72 = vmatprep.subr.mxu0 0.0
    %73 = vmatpush1.msra.mxu0 0.0
    %74 = vmatprep.subr.mxu0 0.0
    %75 = vmatpush1.msra.mxu0 0.0
    %76 = vmatprep.subr.mxu0 0.0
    %77 = vmatpush1.msra.mxu0 0.0
    %78 = vmatprep.subr.mxu0 0.0
    %79 = vmatpush1.msra.mxu0 0.0
    %80 = vmatprep.subr.mxu0 0.0
    %81 = vmatpush1.msra.mxu0 0.0
    %82 = vmatprep.subr.mxu0 0.0
    %83 = vmatpush1.msra.mxu0 0.0
    %84 = vmatprep.subr.mxu0 0.0
    %85 = vmatpush1.msra.mxu0 0.0
    %86 = vmatprep.subr.mxu0 0.0
    %87 = vmatpush1.msra.mxu0 0.0
    %88 = vmatprep.subr.mxu0 0.0
    %89 = vmatpush1.msra.mxu0 0.0
    %90 = vmatprep.subr.mxu0 0.0
    %91 = vmatpush1.msra.mxu0 0.0
    %92 = vmatprep.subr.mxu0 0.0
    %93 = vmatpush1.msra.mxu0 0.0
    %94 = vmatprep.subr.mxu0 0.0
    %95 = vmatpush1.msra.mxu0 0.0
    %96 = vmatprep.subr.mxu0 0.0
    %97 = vmatpush1.msra.mxu0 0.0
    %98 = vmatprep.subr.mxu0 0.0
    %99 = vmatpush1.msra.mxu0 0.0
    %100 = vmatprep.subr.mxu0 0.0
    %101 = vmatpush1.msra.mxu0 0.0
    %102 = vmatprep.subr.mxu0 0.0
    %103 = vmatpush1.msra.mxu0 0.0
    %104 = vmatprep.subr.mxu0 0.0
    %105 = vmatpush1.msra.mxu0 0.0
    %106 = vmatprep.subr.mxu0 0.0
    %107 = vmatpush1.msra.mxu0 0.0
    %108 = vmatprep.subr.mxu0 0.0
    %109 = vmatpush1.msra.mxu0 0.0
    %110 = vmatprep.subr.mxu0 0.0
    %111 = vmatpush1.msra.mxu0 0.0
    %112 = vmatprep.subr.mxu0 0.0
    %113 = vmatpush1.msra.mxu0 0.0
    %114 = vmatprep.subr.mxu0 0.0
    %115 = vmatpush1.msra.mxu0 0.0
    %116 = vmatprep.subr.mxu0 0.0
    %117 = vmatpush1.msra.mxu0 0.0
    %118 = vmatprep.subr.mxu0 0.0
    %119 = vmatpush1.msra.mxu0 0.0
    %120 = vmatprep.subr.mxu0 0.0
    %121 = vmatpush1.msra.mxu0 0.0
    %122 = vmatprep.subr.mxu0 0.0
    %123 = vmatpush1.msra.mxu0 0.0
    %124 = vmatprep.mubr.f32.mxu0 0.0
    %125 = vmatmul.mubr.f32.gmra.mrb[0].mxu0 %v58
    %v126 = vpop.f32.mrb[0].mxu0
    %v127 = vadd.f32 %v54, %v126
    %v128 = vpop.f32.mrb[0].mxu0
    %129 = vdwg.mxu0
    %vm130 = vcmask 7168
    %131 = vst.msk [vmem:[%s3] sm:$0xff] %vm130, %v127
    %133 = vrot.lane.b32.xlu0 %v127, 127
    %v134 = vpop.permute.xlu0 %133
    %vm136 = vcmask 15360
    %137 = vst.msk [vmem:[%s4] sm:$0xff] %vm136, %v134
    %138 = vrot.lane.b32.xlu0 %v127, 125
    %v139 = vpop.permute.xlu0 %138
    %vm141 = vcmask 39936
    %142 = vst.msk [vmem:[#allocation7] sm:$0xff] %vm141, %v139
    // Predicated region
    $region22: #{tpu_custom_call.1} parent=1 // pred_check
      _
    $region23: #{tpu_custom_call.1} parent=1 // pred_check_branch
      %144 = sbr.rel (0) target = $region25
    $region24: #{tpu_custom_call.1} parent=1 // pred_region
      _
    $region25: #{tpu_custom_call.1} parent=1 // pred_fallthru
      _
    // Predicated region
    $region26: #{tpu_custom_call.1} parent=1 // pred_check
      _
    $region27: #{tpu_custom_call.1} parent=1 // pred_check_branch
      %146 = sbr.rel (0) target = $region29
    $region28: #{tpu_custom_call.1} parent=1 // pred_region
      _
    $region29: #{tpu_custom_call.1} parent=1 // pred_fallthru
      _
    // Predicated region
    $region30: #{tpu_custom_call.1} parent=1 // pred_check
      _
    $region31: #{tpu_custom_call.1} parent=1 // pred_check_branch
      %148 = sbr.rel (0) target = $region33
    $region32: #{tpu_custom_call.1} parent=1 // pred_region
      %s150 = ssub.s32 128, 128
      %151 = vsyncadd [#allocation4], %s150
      %s153 = sshll.u32 [#allocation7], 4
      %s154 = int_to_ptr.vmem [resolvable:$true] %s153
      %156 = dma.vmem_to_hbm [thread:$0]  %s154, 128, %s5, [#allocation4]
    $region33: #{tpu_custom_call.1} parent=1 // pred_fallthru
      _
    // Predicated region
    $region34: #{tpu_custom_call.1} parent=1 // pred_check
      _
    $region35: #{tpu_custom_call.1} parent=1 // pred_check_branch
      %158 = sbr.rel (0) target = $region37
    $region36: #{tpu_custom_call.1} parent=1 // pred_region
      _
    $region37: #{tpu_custom_call.1} parent=1 // pred_fallthru
      _
    // Predicated region
    $region38: #{tpu_custom_call.1} parent=1 // pred_check
      _
    $region39: #{tpu_custom_call.1} parent=1 // pred_check_branch
      %160 = sbr.rel (0) target = $region41
    $region40: #{tpu_custom_call.1} parent=1 // pred_region
      _
    $region41: #{tpu_custom_call.1} parent=1 // pred_fallthru
      _
    // Predicated region
    $region42: #{tpu_custom_call.1} parent=1 // pred_check
      _
    $region43: #{tpu_custom_call.1} parent=1 // pred_check_branch
      %162 = sbr.rel (0) target = $region45
    $region44: #{tpu_custom_call.1} parent=1 // pred_region
      %163 = dma.done [#allocation4], 128
    $region45: #{tpu_custom_call.1} parent=1 // pred_fallthru
      _
    %164 = vsyncpa [#allocation3], 1
    %165 = vsyncpa [#allocation6], 1
    %166 = vsyncpa [#allocation4], 1

</llo_original>
